<compile_context>
chip_gen: v7x
topology: tpu7x:2x2x1
jax: 0.10.0
libtpu: 0.0.40
codegen_flags: <defaults>
</compile_context>

<pallas_src>
import functools

import jax
import jax.numpy as jnp
from jax.experimental import pallas as pl
from jax.experimental.pallas import tpu as pltpu

# ----------------------------- config ---------------------------------------
CONFIG = dict(
    mlp_out_channel=32,   # C
    n=6,                  # number of arcface heads
    out_class_num=8,      # classes per head
)
ARCFACE_S = 20.0
EPS = 1e-12               # matches F.normalize eps


# ----------------------------- kernel ---------------------------------------
def _decoder_kernel(x_ref, w_ref, out_ref, *, n_heads, oc, s, use_bf16_matmul):
    # x_ref  : (K, TILE_B, C)       VMEM  (agents-first layout)
    # w_ref  : (C, n*oc)            VMEM  (pre-normalized, pre-transposed weight)
    # out_ref: (TILE_B, oc)         VMEM
    K = x_ref.shape[0]

    # agent max-pool: unrolled elementwise maximum over dense (TB, C) slabs (pure VPU)
    feat = x_ref[0].astype(jnp.float32)
    for k in range(1, K):
        feat = jnp.maximum(feat, x_ref[k].astype(jnp.float32))

    # L2 normalize along C with rsqrt on the EUP.
    # Clamp on the squared norm with EPS^2 to preserve max(||x||, eps) semantics.
    sumsq = jnp.sum(feat * feat, axis=-1, keepdims=True)
    feat = feat * jax.lax.rsqrt(jnp.maximum(sumsq, EPS * EPS))

    w = w_ref[...]
    if use_bf16_matmul:
        feat_mm = feat.astype(jnp.bfloat16)
        w_mm = w.astype(jnp.bfloat16)
    else:
        feat_mm = feat
        w_mm = w.astype(jnp.float32)

    # scaled cosine logits on the MXU: (TB, C) @ (C, n*oc) -> (TB, n*oc), f32 accumulation
    prob = s * jax.lax.dot_general(
        feat_mm, w_mm,
        dimension_numbers=(((1,), (0,)), ((), ())),
        preferred_element_type=jnp.float32,
    )

    # max over the n heads via static lane slices (no in-kernel reshape)
    res = prob[:, 0:oc]
    for j in range(1, n_heads):
        res = jnp.maximum(res, prob[:, j * oc:(j + 1) * oc])

    # softmax over out_class_num; reciprocal of the denominator on the EUP
    m = jnp.max(res, axis=-1, keepdims=True)
    e = jnp.exp(res - m)
    denom = jnp.sum(e, axis=-1, keepdims=True)
    out_ref[...] = e * pl.reciprocal(denom, approx=True)


# ----------------------------- wrapper ---------------------------------------
def decoder_forward(agent_all_feature, arcface_weight, config=CONFIG,
                    s=ARCFACE_S, tile_b=512):
    """agent_all_feature: (B, K, 1, C) float32; arcface_weight: (n*out_class_num, C)."""
    B, K, one, C = agent_all_feature.shape
    assert one == 1 and C == config['mlp_out_channel']
    n, oc = config['n'], config['out_class_num']
    nt = n * oc
    assert arcface_weight.shape == (nt, C)

    # Hoisted weight prep (inference constant): L2-normalize rows, lay out as (C, nt).
    w = arcface_weight.astype(jnp.float32)
    w = w / jnp.maximum(jnp.linalg.norm(w, axis=-1, keepdims=True), EPS)
    w_t = w.T  # (C, nt)

    # Repack input agents-first: (B, K, 1, C) -> (K, B, C), pad batch to a tile multiple.
    if B < tile_b:
        tile_b = max(8, ((B + 7) // 8) * 8)
    B_pad = ((B + tile_b - 1) // tile_b) * tile_b
    x = jnp.transpose(agent_all_feature.reshape(B, K, C), (1, 0, 2))
    if B_pad != B:
        x = jnp.pad(x, ((0, 0), (0, B_pad - B), (0, 0)))

    kernel = functools.partial(
        _decoder_kernel, n_heads=n, oc=oc, s=float(s),
        use_bf16_matmul=(tile_b >= 256))

    res = pl.pallas_call(
        kernel,
        out_shape=jax.ShapeDtypeStruct((B_pad, oc), jnp.float32),
        grid_spec=pltpu.PrefetchScalarGridSpec(
            num_scalar_prefetch=0,
            grid=(B_pad // tile_b,),
            in_specs=[
                pl.BlockSpec((K, tile_b, C), lambda i: (0, i, 0)),
                pl.BlockSpec((C, nt), lambda i: (0, 0)),   # weight stays resident
            ],
            out_specs=pl.BlockSpec((tile_b, oc), lambda i: (i, 0)),
        ),
        compiler_params=pltpu.CompilerParams(
            dimension_semantics=("parallel",)),
    )(x, w_t)

    # drop batch padding; match PyTorch output shape (B, out_class_num, 1)
    return res[:B].reshape(B, oc, 1)


# ----------------------------- reference (pure JAX) ---------------------------
def decoder_reference(agent_all_feature, arcface_weight, config=CONFIG, s=ARCFACE_S):
    B, K, _, C = agent_all_feature.shape
    n, oc = config['n'], config['out_class_num']
    feat = jnp.max(agent_all_feature.reshape(B, K, C), axis=1)
    feat = feat / jnp.maximum(jnp.linalg.norm(feat, axis=-1, keepdims=True), EPS)
    w = arcface_weight / jnp.maximum(
        jnp.linalg.norm(arcface_weight, axis=-1, keepdims=True), EPS)
    prob = s * (feat @ w.T)
    prob = prob.reshape(B, n, oc, 1)
    res = jnp.max(prob, axis=1)                 # (B, oc, 1)
    res = jax.nn.softmax(res, axis=1)
    return res


# ----------------------------- main -------------------------------------------
if __name__ == "__main__":
    key = jax.random.PRNGKey(0)
    k_x, k_w = jax.random.split(key)

    B, K = 2, 4
    C = CONFIG['mlp_out_channel']
    nt = CONFIG['n'] * CONFIG['out_class_num']

    agent_all_feature = jax.random.normal(k_x, (B, K, 1, C), dtype=jnp.float32)

    # deterministic xavier-uniform-like init for the arcface weight (nt, C)
    limit = (6.0 / (nt + C)) ** 0.5
    arcface_weight = jax.random.uniform(
        k_w, (nt, C), minval=-limit, maxval=limit, dtype=jnp.float32)

    out = decoder_forward(agent_all_feature, arcface_weight)
    out = jax.block_until_ready(out)

    ref = decoder_reference(agent_all_feature, arcface_weight)
    assert out.shape == (B, CONFIG['out_class_num'], 1)
    # tolerance accounts for the EUP approximate reciprocal in the softmax denominator
    assert jnp.allclose(out, ref, atol=1e-3, rtol=1e-3), "mismatch vs reference"

    print("KERNEL_OK")
</pallas_src>

<mosaic_0001>
module attributes {stable_mosaic.version = 11 : i64} {
  func.func @_decoder_kernel(%arg0: i32, %arg1: memref<4x8x32xf32, #tpu.memory_space<vmem>>, %arg2: memref<32x48xf32, #tpu.memory_space<vmem>>, %arg3: memref<8x8xf32, #tpu.memory_space<vmem>>) attributes {dimension_semantics = [#tpu.dimension_semantics<parallel>], iteration_bounds = array<i64: 1>, scalar_prefetch = 0 : i64, scratch_operands = 0 : i64, tpu.core_type = #tpu.core_type<tc>, window_params = [{transform_indices = @transform_0, window_bounds = array<i64: 4, 8, 32>}, {pipeline_mode = #tpu.pipeline_mode<synchronous>, transform_indices = @transform_1, window_bounds = array<i64: 32, 48>}, {transform_indices = @transform_2, window_bounds = array<i64: 8, 8>}]} {
    %c0 = arith.constant 0 : index
    %c0_0 = arith.constant 0 : index
    %c0_1 = arith.constant 0 : index
    %0 = vector.load %arg1[%c0, %c0_0, %c0_1] : memref<4x8x32xf32, #tpu.memory_space<vmem>>, vector<1x8x32xf32>
    %1 = vector.shape_cast %0 : vector<1x8x32xf32> to vector<8x32xf32>
    %c1 = arith.constant 1 : index
    %c0_2 = arith.constant 0 : index
    %c0_3 = arith.constant 0 : index
    %2 = vector.load %arg1[%c1, %c0_2, %c0_3] : memref<4x8x32xf32, #tpu.memory_space<vmem>>, vector<1x8x32xf32>
    %3 = vector.shape_cast %2 : vector<1x8x32xf32> to vector<8x32xf32>
    %4 = arith.maximumf %1, %3 : vector<8x32xf32>
    %c2 = arith.constant 2 : index
    %c0_4 = arith.constant 0 : index
    %c0_5 = arith.constant 0 : index
    %5 = vector.load %arg1[%c2, %c0_4, %c0_5] : memref<4x8x32xf32, #tpu.memory_space<vmem>>, vector<1x8x32xf32>
    %6 = vector.shape_cast %5 : vector<1x8x32xf32> to vector<8x32xf32>
    %7 = arith.maximumf %4, %6 : vector<8x32xf32>
    %c3 = arith.constant 3 : index
    %c0_6 = arith.constant 0 : index
    %c0_7 = arith.constant 0 : index
    %8 = vector.load %arg1[%c3, %c0_6, %c0_7] : memref<4x8x32xf32, #tpu.memory_space<vmem>>, vector<1x8x32xf32>
    %9 = vector.shape_cast %8 : vector<1x8x32xf32> to vector<8x32xf32>
    %10 = arith.maximumf %7, %9 : vector<8x32xf32>
    %11 = arith.mulf %10, %10 : vector<8x32xf32>
    %cst = arith.constant dense<0.000000e+00> : vector<8xf32>
    %12 = vector.multi_reduction <add>, %11, %cst [1] : vector<8x32xf32> to vector<8xf32>
    %13 = vector.shape_cast %12 : vector<8xf32> to vector<8x1xf32>
    %cst_8 = arith.constant 1.000000e-24 : f32
    %14 = vector.broadcast %cst_8 : f32 to vector<8x1xf32>
    %15 = arith.maximumf %13, %14 : vector<8x1xf32>
    %16 = math.rsqrt %15 : vector<8x1xf32>
    %17 = vector.broadcast %16 : vector<8x1xf32> to vector<8x32xf32>
    %18 = arith.mulf %10, %17 : vector<8x32xf32>
    %c0_9 = arith.constant 0 : index
    %c0_10 = arith.constant 0 : index
    %19 = vector.load %arg2[%c0_9, %c0_10] : memref<32x48xf32, #tpu.memory_space<vmem>>, vector<32x48xf32>
    %cst_11 = arith.constant dense<0.000000e+00> : vector<8x48xf32>
    %20 = tpu.matmul %18, %19, %cst_11 {dimension_numbers = #tpu.dot_dimension_numbers<[1], [0], [0], [1], [0, 0, 1, 1], [], []>} : vector<8x32xf32>, vector<32x48xf32>, vector<8x48xf32> -> vector<8x48xf32>
    %cst_12 = arith.constant 2.000000e+01 : f32
    %21 = vector.broadcast %cst_12 : f32 to vector<8x48xf32>
    %22 = arith.mulf %21, %20 : vector<8x48xf32>
    %23 = vector.extract_strided_slice %22 {offsets = [0, 0], sizes = [8, 8], strides = [1, 1]} : vector<8x48xf32> to vector<8x8xf32>
    %24 = vector.extract_strided_slice %22 {offsets = [0, 8], sizes = [8, 8], strides = [1, 1]} : vector<8x48xf32> to vector<8x8xf32>
    %25 = arith.maximumf %23, %24 : vector<8x8xf32>
    %26 = vector.extract_strided_slice %22 {offsets = [0, 16], sizes = [8, 8], strides = [1, 1]} : vector<8x48xf32> to vector<8x8xf32>
    %27 = arith.maximumf %25, %26 : vector<8x8xf32>
    %28 = vector.extract_strided_slice %22 {offsets = [0, 24], sizes = [8, 8], strides = [1, 1]} : vector<8x48xf32> to vector<8x8xf32>
    %29 = arith.maximumf %27, %28 : vector<8x8xf32>
    %30 = vector.extract_strided_slice %22 {offsets = [0, 32], sizes = [8, 8], strides = [1, 1]} : vector<8x48xf32> to vector<8x8xf32>
    %31 = arith.maximumf %29, %30 : vector<8x8xf32>
    %32 = vector.extract_strided_slice %22 {offsets = [0, 40], sizes = [8, 8], strides = [1, 1]} : vector<8x48xf32> to vector<8x8xf32>
    %33 = arith.maximumf %31, %32 : vector<8x8xf32>
    %cst_13 = arith.constant dense<0xFF800000> : vector<8xf32>
    %34 = vector.multi_reduction <maximumf>, %33, %cst_13 [1] : vector<8x8xf32> to vector<8xf32>
    %35 = vector.shape_cast %34 : vector<8xf32> to vector<8x1xf32>
    %36 = vector.broadcast %35 : vector<8x1xf32> to vector<8x8xf32>
    %37 = arith.subf %33, %36 : vector<8x8xf32>
    %38 = math.exp %37 : vector<8x8xf32>
    %cst_14 = arith.constant dense<0.000000e+00> : vector<8xf32>
    %39 = vector.multi_reduction <add>, %38, %cst_14 [1] : vector<8x8xf32> to vector<8xf32>
    %40 = vector.shape_cast %39 : vector<8xf32> to vector<8x1xf32>
    %41 = tpu.reciprocal %40 {approx = true} : vector<8x1xf32> -> vector<8x1xf32>
    %42 = vector.broadcast %41 : vector<8x1xf32> to vector<8x8xf32>
    %43 = arith.mulf %38, %42 : vector<8x8xf32>
    %c0_15 = arith.constant 0 : index
    %c0_16 = arith.constant 0 : index
    %44 = vector.load %arg3[%c0_15, %c0_16] : memref<8x8xf32, #tpu.memory_space<vmem>>, vector<8x8xf32>
    tpu.vector_store %arg3[%c0_15, %c0_16], %43 {strides = array<i32>} : memref<8x8xf32, #tpu.memory_space<vmem>>, vector<8x8xf32>,
    return
  }
  func.func @transform_0(%arg0: i32) -> (i32, i32, i32) {
    %c0_i32 = arith.constant 0 : i32
    %c0_i32_0 = arith.constant 0 : i32
    %c0_i32_1 = arith.constant 0 : i32
    return %c0_i32, %arg0, %c0_i32_0 : i32, i32, i32
  }
  func.func @transform_1(%arg0: i32) -> (i32, i32) {
    %c0_i32 = arith.constant 0 : i32
    %c0_i32_0 = arith.constant 0 : i32
    %c0_i32_1 = arith.constant 0 : i32
    return %c0_i32, %c0_i32_0 : i32, i32
  }
  func.func @transform_2(%arg0: i32) -> (i32, i32) {
    %c0_i32 = arith.constant 0 : i32
    %c0_i32_0 = arith.constant 0 : i32
    return %arg0, %c0_i32 : i32, i32
  }
}

</mosaic_0001>

<llo_original>
// kernel: tpu_custom_call.1
$region0: #{tpu_custom_call.1}
  #allocation0 [shape = 'u32[]', space=smem, size = 0x4, offset = 0x4, fixed_abs, tag = 'smem constant byte address 0x4 - core index']
  #allocation1 [shape = 'u32[144,128]{1,0:T(1,128)}', space=vmem, size = 0x12000, scoped, tag = 'internal scratch']
  %s0 = inlined_call_operand.hbm [shape: f32[4,8,32], index: 0, kind: input, shape index: {}]
  %s1 = inlined_call_operand.hbm [shape: f32[32,48], index: 1, kind: input, shape index: {}]
  %s2 = inlined_call_operand.hbm [shape: f32[8,8], index: 2, kind: output, shape index: {}]
  %s3 = sld [smem:[#allocation0]]
  $region26: #{tpu_custom_call.1} parent=0
    _
  %s5 = ssub.s32 1, %s3
  %s6 = scalar_select 0, %s5, %s3
  $region1: #{tpu_custom_call.1} parent=0
    #allocation2 [shape = 'u8[16384]{0}', space=vmem, size = 0x4000, scoped, tag = 'input window, operand 0, single buffered']
    #allocation3 [shape = 's32[1]{0}', space=sflag, size = 0x4, scoped, tag = 'scoped memory for tpu_custom_call.1']
    #allocation4 [shape = 's32[1]{0}', space=sflag, size = 0x4, scoped, tag = 'scoped memory for tpu_custom_call.1']
    #allocation5 [shape = 'u8[16384]{0}', space=vmem, size = 0x4000, scoped, tag = 'input window, operand 1, single buffered']
    #allocation6 [shape = 's32[1]{0}', space=sflag, size = 0x4, scoped, tag = 'scoped memory for tpu_custom_call.1']
    #allocation7 [shape = 'u8[4096]{0}', space=vmem, size = 0x1000, scoped, tag = 'output window, operand 0, single buffered']
    %7 = vsyncpa [#allocation3], 0
    %8 = vsyncpa [#allocation6], 0
    %9 = vsyncpa [#allocation4], 0
    // Predicated region
    $region2: #{tpu_custom_call.1} parent=1 // pred_check
      _
    $region3: #{tpu_custom_call.1} parent=1 // pred_check_branch
      %11 = sbr.rel (0) target = $region5
    $region4: #{tpu_custom_call.1} parent=1 // pred_region
      %s13 = ssub.s32 512, 512
      %14 = vsyncadd [#allocation3], %s13
      %s15 = sshll.u32 [#allocation2], 4
      %s16 = int_to_ptr.vmem [resolvable:$true] %s15
      %21 = dma.hbm_to_vmem [thread:$0]  %s0, 512, %s16, [#allocation3], 128, 128, 8
    $region5: #{tpu_custom_call.1} parent=1 // pred_fallthru
      _
    // Predicated region
    $region6: #{tpu_custom_call.1} parent=1 // pred_check
      _
    $region7: #{tpu_custom_call.1} parent=1 // pred_check_branch
      %23 = sbr.rel (0) target = $region9
    $region8: #{tpu_custom_call.1} parent=1 // pred_region
      %s25 = ssub.s32 512, 512
      %26 = vsyncadd [#allocation6], %s25
      %s27 = sshll.u32 [#allocation5], 4
      %s28 = int_to_ptr.vmem [resolvable:$true] %s27
      %33 = dma.hbm_to_vmem [thread:$0]  %s1, 512, %s28, [#allocation6], 128, 128, 8
    $region9: #{tpu_custom_call.1} parent=1 // pred_fallthru
      _
    // Predicated region
    $region10: #{tpu_custom_call.1} parent=1 // pred_check
      _
    $region11: #{tpu_custom_call.1} parent=1 // pred_check_branch
      %35 = sbr.rel (0) target = $region13
    $region12: #{tpu_custom_call.1} parent=1 // pred_region
      %36 = dma.done [#allocation3], 512
    $region13: #{tpu_custom_call.1} parent=1 // pred_fallthru
      _
    // Predicated region
    $region14: #{tpu_custom_call.1} parent=1 // pred_check
      _
    $region15: #{tpu_custom_call.1} parent=1 // pred_check_branch
      %38 = sbr.rel (0) target = $region17
    $region16: #{tpu_custom_call.1} parent=1 // pred_region
      %39 = dma.done [#allocation6], 512
    $region17: #{tpu_custom_call.1} parent=1 // pred_fallthru
      _
    %v40 = vld [vmem:[#allocation2] sm:$0xff]
    %s41 = scalar_lea.vmem [#allocation2], 8
    %v42 = vld [vmem:[%s41] sm:$0xff]
    %v43 = vmax.f32 %v40, %v42
    %s44 = scalar_lea.vmem [#allocation2], 16
    %v45 = vld [vmem:[%s44] sm:$0xff]
    %v46 = vmax.f32 %v43, %v45
    %s47 = scalar_lea.vmem [#allocation2], 24
    %v48 = vld [vmem:[%s47] sm:$0xff]
    %v49 = vmax.f32 %v46, %v48
    %v50 = vmul.f32 %v49, %v49
    %vm51 = vcmask 261120
    %v52 = vsel %vm51, %v50, 0.0
    %53 = vadd.xlane.f32.xlu0 %v52
    %v54 = vpop.xlane.xlu0 %53
    %v55 = vmax.f32 %v54, 1e-24
    %v56 = vrsqrt.pop %v55
    %v57 = vmul.f32 %v49, %v56
    %v58 = vld [vmem:[#allocation5] sm:$0xff]
    %v59 = vld [vmem:[#allocation5 + $0x8] sm:$0xff]
    %v60 = vld [vmem:[#allocation5 + $0x10] sm:$0xff]
    %v61 = vld [vmem:[#allocation5 + $0x18] sm:$0xff]
    %v63 = vsel %vm51, %v57, 0
    %65 = vmatprep.subr.mxu0 0.0
    %66 = vmatpush1.msra.mxu0 %v58
    %67 = vmatprep.subr.mxu0 0.0
    %68 = vmatpush1.msra.mxu0 %v59
    %69 = vmatprep.subr.mxu0 0.0
    %70 = vmatpush1.msra.mxu0 %v60
    %71 = vmatprep.subr.mxu0 0.0
    %72 = vmatpush1.msra.mxu0 %v61
    %73 = vmatprep.subr.mxu0 0.0
    %74 = vmatpush1.msra.mxu0 0.0
    %75 = vmatprep.subr.mxu0 0.0
    %76 = vmatpush1.msra.mxu0 0.0
    %77 = vmatprep.subr.mxu0 0.0
    %78 = vmatpush1.msra.mxu0 0.0
    %79 = vmatprep.subr.mxu0 0.0
    %80 = vmatpush1.msra.mxu0 0.0
    %81 = vmatprep.subr.mxu0 0.0
    %82 = vmatpush1.msra.mxu0 0.0
    %83 = vmatprep.subr.mxu0 0.0
    %84 = vmatpush1.msra.mxu0 0.0
    %85 = vmatprep.subr.mxu0 0.0
    %86 = vmatpush1.msra.mxu0 0.0
    %87 = vmatprep.subr.mxu0 0.0
    %88 = vmatpush1.msra.mxu0 0.0
    %89 = vmatprep.subr.mxu0 0.0
    %90 = vmatpush1.msra.mxu0 0.0
    %91 = vmatprep.subr.mxu0 0.0
    %92 = vmatpush1.msra.mxu0 0.0
    %93 = vmatprep.subr.mxu0 0.0
    %94 = vmatpush1.msra.mxu0 0.0
    %95 = vmatprep.subr.mxu0 0.0
    %96 = vmatpush1.msra.mxu0 0.0
    %97 = vmatprep.subr.mxu0 0.0
    %98 = vmatpush1.msra.mxu0 0.0
    %99 = vmatprep.subr.mxu0 0.0
    %100 = vmatpush1.msra.mxu0 0.0
    %101 = vmatprep.subr.mxu0 0.0
    %102 = vmatpush1.msra.mxu0 0.0
    %103 = vmatprep.subr.mxu0 0.0
    %104 = vmatpush1.msra.mxu0 0.0
    %105 = vmatprep.subr.mxu0 0.0
    %106 = vmatpush1.msra.mxu0 0.0
    %107 = vmatprep.subr.mxu0 0.0
    %108 = vmatpush1.msra.mxu0 0.0
    %109 = vmatprep.subr.mxu0 0.0
    %110 = vmatpush1.msra.mxu0 0.0
    %111 = vmatprep.subr.mxu0 0.0
    %112 = vmatpush1.msra.mxu0 0.0
    %113 = vmatprep.subr.mxu0 0.0
    %114 = vmatpush1.msra.mxu0 0.0
    %115 = vmatprep.subr.mxu0 0.0
    %116 = vmatpush1.msra.mxu0 0.0
    %117 = vmatprep.subr.mxu0 0.0
    %118 = vmatpush1.msra.mxu0 0.0
    %119 = vmatprep.subr.mxu0 0.0
    %120 = vmatpush1.msra.mxu0 0.0
    %121 = vmatprep.subr.mxu0 0.0
    %122 = vmatpush1.msra.mxu0 0.0
    %123 = vmatprep.subr.mxu0 0.0
    %124 = vmatpush1.msra.mxu0 0.0
    %125 = vmatprep.subr.mxu0 0.0
    %126 = vmatpush1.msra.mxu0 0.0
    %127 = vmatprep.subr.mxu0 0.0
    %128 = vmatpush1.msra.mxu0 0.0
    %129 = vmatprep.mubr.f32.mxu0 0.0
    %130 = vmatmul.mubr.f32.gmra.mrb[0].mxu0 %v63
    %v131 = vpop.f32.mrb[0].mxu0
    %v132 = vadd.f32 0.0, %v131
    %v133 = vpop.f32.mrb[0].mxu0
    %134 = vdwg.mxu0
    %v135 = vmul.f32 %v132, 20.0
    %137 = vrot.lane.b32.xlu0 %v135, 120
    %v138 = vpop.permute.xlu0 %137
    %v140 = vmax.f32 %v135, %v138
    %141 = vrot.lane.b32.xlu0 %v135, 112
    %v142 = vpop.permute.xlu0 %141
    %v144 = vmax.f32 %v140, %v142
    %145 = vrot.lane.b32.xlu0 %v135, 104
    %v146 = vpop.permute.xlu0 %145
    %v148 = vmax.f32 %v144, %v146
    %149 = vrot.lane.b32.xlu0 %v135, 96
    %v150 = vpop.permute.xlu0 %149
    %v152 = vmax.f32 %v148, %v150
    %153 = vrot.lane.b32.xlu0 %v135, 88
    %v154 = vpop.permute.xlu0 %153
    %v156 = vmax.f32 %v152, %v154
    %vm157 = vcmask 64512
    %v158 = vsel %vm157, %v156, -inf
    %159 = vmax.xlane.f32.xlu0 %v158
    %v160 = vpop.xlane.xlu0 %159
    %v161 = vsub.f32 %v156, %v160
    %v162 = vmul.f32 %v161, 1.442695
    %v163 = vpow.pop %v162
    %v164 = vsel %vm157, %v163, 0.0
    %165 = vadd.xlane.f32.xlu0 %v164
    %v166 = vpop.xlane.xlu0 %165
    %v167 = vrcp.pop %v166
    %v168 = vmul.f32 %v163, %v167
    %169 = vst.msk [vmem:[#allocation7] sm:$0xff] %vm157, %v168
    // Predicated region
    $region18: #{tpu_custom_call.1} parent=1 // pred_check
      _
    $region19: #{tpu_custom_call.1} parent=1 // pred_check_branch
      %171 = sbr.rel (0) target = $region21
    $region20: #{tpu_custom_call.1} parent=1 // pred_region
      %s173 = ssub.s32 128, 128
      %174 = vsyncadd [#allocation4], %s173
      %s176 = sshll.u32 [#allocation7], 4
      %s177 = int_to_ptr.vmem [resolvable:$true] %s176
      %179 = dma.vmem_to_hbm [thread:$0]  %s177, 128, %s2, [#allocation4]
    $region21: #{tpu_custom_call.1} parent=1 // pred_fallthru
      _
    // Predicated region
    $region22: #{tpu_custom_call.1} parent=1 // pred_check
      _
    $region23: #{tpu_custom_call.1} parent=1 // pred_check_branch
      %181 = sbr.rel (0) target = $region25
    $region24: #{tpu_custom_call.1} parent=1 // pred_region
      %182 = dma.done [#allocation4], 128
    $region25: #{tpu_custom_call.1} parent=1 // pred_fallthru
      _
    %183 = vsyncpa [#allocation3], 1
    %184 = vsyncpa [#allocation6], 1
    %185 = vsyncpa [#allocation4], 1

</llo_original>
